<compile_context>
chip_gen: v7x
topology: tpu7x:2x2x1
jax: 0.10.0
libtpu: 0.0.40
codegen_flags: <defaults>
</compile_context>

<pallas_src>
import functools

import jax
import jax.numpy as jnp
from jax import lax
from jax.experimental import pallas as pl
from jax.experimental.pallas import tpu as pltpu

# Keep the table VMEM-resident only up to this size (conservative for v7x's
# 64 MiB physical VMEM; v5e/v6e have 128 MiB so this is always safe).
_VMEM_RESIDENT_LIMIT_BYTES = 48 * 1024 * 1024


def _round_up(x: int, m: int) -> int:
    return ((x + m - 1) // m) * m


def _gather_kernel(b_tile: int, idx_ref, table_ref, out_ref):
    """Gather b_tile rows of the VMEM-resident table into one dense output slab.

    idx_ref   : SMEM int32[B_padded]       (scalar-prefetched lookup indices)
    table_ref : VMEM  f32[num_rows, z_dim] (full table; constant index_map -> loaded once)
    out_ref   : VMEM  f32[b_tile, z_dim]   (lane/sublane-dense output block)
    """
    base = pl.program_id(0) * b_tile

    def body(b, carry):
        row = idx_ref[base + b]                                   # SMEM scalar read
        out_ref[pl.ds(b, 1), :] = table_ref[pl.ds(row, 1), :]      # VMEM vld -> vst
        return carry

    lax.fori_loop(0, b_tile, body, 0, unroll=min(b_tile, 8))


def _pallas_gather(table: jax.Array, idx_padded: jax.Array, b_tile: int) -> jax.Array:
    num_rows, z_dim = table.shape
    b_padded = idx_padded.shape[0]
    num_tiles = b_padded // b_tile
    itemsize = table.dtype.itemsize

    table_bytes = num_rows * z_dim * itemsize
    out_block_bytes = b_tile * z_dim * itemsize
    vmem_limit = int(max(32 * 1024 * 1024,
                         table_bytes + 4 * out_block_bytes + (2 << 20)))

    return pl.pallas_call(
        functools.partial(_gather_kernel, b_tile),
        out_shape=jax.ShapeDtypeStruct((b_padded, z_dim), table.dtype),
        grid_spec=pltpu.PrefetchScalarGridSpec(
            num_scalar_prefetch=1,
            grid=(num_tiles,),
            in_specs=[
                # Full table, constant block index -> DMA'd into VMEM once and
                # kept resident across all batch tiles (no per-row HBM gather).
                pl.BlockSpec((num_rows, z_dim), lambda i, idx: (0, 0)),
            ],
            out_specs=pl.BlockSpec((b_tile, z_dim), lambda i, idx: (i, 0)),
        ),
        compiler_params=pltpu.CompilerParams(
            # Batch tiles are independent lookups.
            # TODO(synk): on v7x, pltpu.CORE_PARALLEL / pl.core_map could split
            # the batch-tile axis across both TensorCores.
            dimension_semantics=("parallel",),
            vmem_limit_bytes=vmem_limit,
        ),
        cost_estimate=pl.CostEstimate(
            flops=0,
            transcendentals=0,
            bytes_accessed=int(table_bytes + b_padded * 4
                               + b_padded * z_dim * itemsize),
        ),
    )(idx_padded, table)


@jax.jit
def embedding_lookup(table: jax.Array, indices: jax.Array) -> jax.Array:
    """Batched Pallas equivalent of Embedding.forward.

    table:   (num_rows, z_dim) float table (num_rows = h * k)
    indices: (B,) integer lookup indices
    returns: (B, z_dim) == table[indices]  (Python-list semantics for negatives)
    """
    num_rows, z_dim = table.shape
    idx = jnp.asarray(indices, dtype=jnp.int32)
    B = idx.shape[0]

    # Python-list semantics for negative indices (z_list[-1] -> last row),
    # then clamp so a wild index can never read out of bounds.
    idx = jnp.where(idx < 0, idx + num_rows, idx)
    idx = jnp.clip(idx, 0, num_rows - 1)

    table_bytes = num_rows * z_dim * table.dtype.itemsize
    if table_bytes > _VMEM_RESIDENT_LIMIT_BYTES:
        # TODO(synk): manual pl.ANY + pltpu.make_async_copy row-gather path
        # (8-16 in-flight DMAs) for tables that do not fit in VMEM.
        return jnp.take(table, idx, axis=0)

    # Batch many lookups per grid step; output block is sublane (>=8) and
    # lane (full z_dim) dense.
    b_tile = min(256, _round_up(B, 8))
    b_padded = _round_up(B, b_tile)
    idx_padded = jnp.pad(idx, (0, b_padded - B))

    out = _pallas_gather(table, idx_padded, b_tile)
    return out[:B]


def embedding_forward(table: jax.Array, list_index) -> jax.Array:
    """Exact analogue of Embedding.forward(list_index): returns a (z_dim,) vector."""
    idx = jnp.atleast_1d(jnp.asarray(list_index, dtype=jnp.int32))
    return embedding_lookup(table, idx)[0]


def init_embedding_params(key, z_num, z_dim):
    """Deterministic stand-in for torch.randn per ParameterList entry (row = i*k + j)."""
    h, k = z_num
    return jax.random.normal(key, (h * k, z_dim), dtype=jnp.float32)


if __name__ == "__main__":
    key = jax.random.PRNGKey(0)

    # Small shapes consistent with the module: z_num = (h, k) = (2, 4), z_dim = 32.
    z_num = (2, 4)
    z_dim = 32
    h, k = z_num

    tkey, ikey = jax.random.split(key)
    table = init_embedding_params(tkey, z_num, z_dim)

    # Single lookup, matching Embedding.forward(list_index).
    single = jax.block_until_ready(embedding_forward(table, 5))
    assert single.shape == (z_dim,)
    assert bool(jnp.allclose(single, table[5])), "single-lookup mismatch"

    # Negative index: Python-list semantics (z_list[-1] is the last parameter).
    neg = jax.block_until_ready(embedding_forward(table, -1))
    assert bool(jnp.allclose(neg, table[h * k - 1])), "negative-index mismatch"

    # Batched lookups (amortizes launch / per-grid-step overhead).
    B = 8
    indices = jax.random.randint(ikey, (B,), 0, h * k, dtype=jnp.int32)
    batched = jax.block_until_ready(embedding_lookup(table, indices))
    assert batched.shape == (B, z_dim)
    assert bool(jnp.allclose(batched, table[indices])), "batched-lookup mismatch"

    print("KERNEL_OK")
</pallas_src>

<mosaic_0001>
module attributes {stable_mosaic.version = 11 : i64} {
  func.func @_gather_kernel(%arg0: i32, %arg1: memref<8xi32, #tpu.memory_space<smem>>, %arg2: memref<8x32xf32, #tpu.memory_space<vmem>>, %arg3: memref<8x32xf32, #tpu.memory_space<vmem>>) attributes {dimension_semantics = [#tpu.dimension_semantics<parallel>], iteration_bounds = array<i64: 1>, scalar_prefetch = 1 : i64, scratch_operands = 0 : i64, tpu.core_type = #tpu.core_type<tc>, window_params = [{pipeline_mode = #tpu.pipeline_mode<synchronous>, transform_indices = @transform_0, window_bounds = array<i64: 8, 32>}, {transform_indices = @transform_1, window_bounds = array<i64: 8, 32>}]} {
    %c8_i32 = arith.constant 8 : i32
    %0 = arith.muli %arg0, %c8_i32 : i32
    %c0_i32 = arith.constant 0 : i32
    %1 = arith.addi %0, %c0_i32 : i32
    %2 = arith.index_cast %1 : i32 to index
    %3 = memref.load %arg1[%2] : memref<8xi32, #tpu.memory_space<smem>>
    %4 = arith.index_cast %3 : i32 to index
    %c0 = arith.constant 0 : index
    %5 = vector.load %arg2[%4, %c0] : memref<8x32xf32, #tpu.memory_space<vmem>>, vector<1x32xf32>
    %6 = arith.index_cast %c0_i32 : i32 to index
    %c0_0 = arith.constant 0 : index
    %7 = vector.load %arg3[%6, %c0_0] : memref<8x32xf32, #tpu.memory_space<vmem>>, vector<1x32xf32>
    tpu.vector_store %arg3[%6, %c0_0], %5 {strides = array<i32>} : memref<8x32xf32, #tpu.memory_space<vmem>>, vector<1x32xf32>,
    %c1_i32 = arith.constant 1 : i32
    %8 = arith.addi %0, %c1_i32 : i32
    %9 = arith.index_cast %8 : i32 to index
    %10 = memref.load %arg1[%9] : memref<8xi32, #tpu.memory_space<smem>>
    %11 = arith.index_cast %10 : i32 to index
    %c0_1 = arith.constant 0 : index
    %12 = vector.load %arg2[%11, %c0_1] : memref<8x32xf32, #tpu.memory_space<vmem>>, vector<1x32xf32>
    %13 = arith.index_cast %c1_i32 : i32 to index
    %c0_2 = arith.constant 0 : index
    %14 = vector.load %arg3[%13, %c0_2] : memref<8x32xf32, #tpu.memory_space<vmem>>, vector<1x32xf32>
    tpu.vector_store %arg3[%13, %c0_2], %12 {strides = array<i32>} : memref<8x32xf32, #tpu.memory_space<vmem>>, vector<1x32xf32>,
    %c2_i32 = arith.constant 2 : i32
    %15 = arith.addi %0, %c2_i32 : i32
    %16 = arith.index_cast %15 : i32 to index
    %17 = memref.load %arg1[%16] : memref<8xi32, #tpu.memory_space<smem>>
    %18 = arith.index_cast %17 : i32 to index
    %c0_3 = arith.constant 0 : index
    %19 = vector.load %arg2[%18, %c0_3] : memref<8x32xf32, #tpu.memory_space<vmem>>, vector<1x32xf32>
    %20 = arith.index_cast %c2_i32 : i32 to index
    %c0_4 = arith.constant 0 : index
    %21 = vector.load %arg3[%20, %c0_4] : memref<8x32xf32, #tpu.memory_space<vmem>>, vector<1x32xf32>
    tpu.vector_store %arg3[%20, %c0_4], %19 {strides = array<i32>} : memref<8x32xf32, #tpu.memory_space<vmem>>, vector<1x32xf32>,
    %c3_i32 = arith.constant 3 : i32
    %22 = arith.addi %0, %c3_i32 : i32
    %23 = arith.index_cast %22 : i32 to index
    %24 = memref.load %arg1[%23] : memref<8xi32, #tpu.memory_space<smem>>
    %25 = arith.index_cast %24 : i32 to index
    %c0_5 = arith.constant 0 : index
    %26 = vector.load %arg2[%25, %c0_5] : memref<8x32xf32, #tpu.memory_space<vmem>>, vector<1x32xf32>
    %27 = arith.index_cast %c3_i32 : i32 to index
    %c0_6 = arith.constant 0 : index
    %28 = vector.load %arg3[%27, %c0_6] : memref<8x32xf32, #tpu.memory_space<vmem>>, vector<1x32xf32>
    tpu.vector_store %arg3[%27, %c0_6], %26 {strides = array<i32>} : memref<8x32xf32, #tpu.memory_space<vmem>>, vector<1x32xf32>,
    %c4_i32 = arith.constant 4 : i32
    %29 = arith.addi %0, %c4_i32 : i32
    %30 = arith.index_cast %29 : i32 to index
    %31 = memref.load %arg1[%30] : memref<8xi32, #tpu.memory_space<smem>>
    %32 = arith.index_cast %31 : i32 to index
    %c0_7 = arith.constant 0 : index
    %33 = vector.load %arg2[%32, %c0_7] : memref<8x32xf32, #tpu.memory_space<vmem>>, vector<1x32xf32>
    %34 = arith.index_cast %c4_i32 : i32 to index
    %c0_8 = arith.constant 0 : index
    %35 = vector.load %arg3[%34, %c0_8] : memref<8x32xf32, #tpu.memory_space<vmem>>, vector<1x32xf32>
    tpu.vector_store %arg3[%34, %c0_8], %33 {strides = array<i32>} : memref<8x32xf32, #tpu.memory_space<vmem>>, vector<1x32xf32>,
    %c5_i32 = arith.constant 5 : i32
    %36 = arith.addi %0, %c5_i32 : i32
    %37 = arith.index_cast %36 : i32 to index
    %38 = memref.load %arg1[%37] : memref<8xi32, #tpu.memory_space<smem>>
    %39 = arith.index_cast %38 : i32 to index
    %c0_9 = arith.constant 0 : index
    %40 = vector.load %arg2[%39, %c0_9] : memref<8x32xf32, #tpu.memory_space<vmem>>, vector<1x32xf32>
    %41 = arith.index_cast %c5_i32 : i32 to index
    %c0_10 = arith.constant 0 : index
    %42 = vector.load %arg3[%41, %c0_10] : memref<8x32xf32, #tpu.memory_space<vmem>>, vector<1x32xf32>
    tpu.vector_store %arg3[%41, %c0_10], %40 {strides = array<i32>} : memref<8x32xf32, #tpu.memory_space<vmem>>, vector<1x32xf32>,
    %c6_i32 = arith.constant 6 : i32
    %43 = arith.addi %0, %c6_i32 : i32
    %44 = arith.index_cast %43 : i32 to index
    %45 = memref.load %arg1[%44] : memref<8xi32, #tpu.memory_space<smem>>
    %46 = arith.index_cast %45 : i32 to index
    %c0_11 = arith.constant 0 : index
    %47 = vector.load %arg2[%46, %c0_11] : memref<8x32xf32, #tpu.memory_space<vmem>>, vector<1x32xf32>
    %48 = arith.index_cast %c6_i32 : i32 to index
    %c0_12 = arith.constant 0 : index
    %49 = vector.load %arg3[%48, %c0_12] : memref<8x32xf32, #tpu.memory_space<vmem>>, vector<1x32xf32>
    tpu.vector_store %arg3[%48, %c0_12], %47 {strides = array<i32>} : memref<8x32xf32, #tpu.memory_space<vmem>>, vector<1x32xf32>,
    %c7_i32 = arith.constant 7 : i32
    %50 = arith.addi %0, %c7_i32 : i32
    %51 = arith.index_cast %50 : i32 to index
    %52 = memref.load %arg1[%51] : memref<8xi32, #tpu.memory_space<smem>>
    %53 = arith.index_cast %52 : i32 to index
    %c0_13 = arith.constant 0 : index
    %54 = vector.load %arg2[%53, %c0_13] : memref<8x32xf32, #tpu.memory_space<vmem>>, vector<1x32xf32>
    %55 = arith.index_cast %c7_i32 : i32 to index
    %c0_14 = arith.constant 0 : index
    %56 = vector.load %arg3[%55, %c0_14] : memref<8x32xf32, #tpu.memory_space<vmem>>, vector<1x32xf32>
    tpu.vector_store %arg3[%55, %c0_14], %54 {strides = array<i32>} : memref<8x32xf32, #tpu.memory_space<vmem>>, vector<1x32xf32>,
    %c8_i32_15 = arith.constant 8 : i32
    return
  }
  func.func @transform_0(%arg0: i32, %arg1: memref<8xi32, #tpu.memory_space<smem>>) -> (i32, i32) {
    %c0_i32 = arith.constant 0 : i32
    %c0_i32_0 = arith.constant 0 : i32
    %c0_i32_1 = arith.constant 0 : i32
    return %c0_i32, %c0_i32_0 : i32, i32
  }
  func.func @transform_1(%arg0: i32, %arg1: memref<8xi32, #tpu.memory_space<smem>>) -> (i32, i32) {
    %c0_i32 = arith.constant 0 : i32
    %c0_i32_0 = arith.constant 0 : i32
    return %arg0, %c0_i32 : i32, i32
  }
}

</mosaic_0001>

<llo_original>
// kernel: embedding_lookup.1
$region0: #{embedding_lookup.1}
  #allocation0 [shape = 'u32[]', space=smem, size = 0x4, offset = 0x4, fixed_abs, tag = 'smem constant byte address 0x4 - core index']
  #allocation1 [shape = 'u32[144,128]{1,0:T(1,128)}', space=vmem, size = 0x12000, scoped, tag = 'internal scratch']
  #allocation2 [shape = 's32[1]{0}', space=sflag, size = 0x4, scoped, tag = 'scoped memory for embedding_lookup.1']
  #allocation3 [shape = 'u8[512]{0}', space=smem, size = 0x200, scoped, tag = 'prefetched SMEM operand 0']
  %s0 = inlined_call_operand.vmem [shape: s32[8], index: 0, kind: input, shape index: {}]
  %s1 = inlined_call_operand.vmem [shape: f32[8,32], index: 1, kind: input, shape index: {}]
  %s2 = inlined_call_operand.vmem [shape: f32[8,32], index: 2, kind: output, shape index: {}]
  %s3 = sld [smem:[#allocation0]]
  $region14: #{embedding_lookup.1} parent=0
    _
  %s5 = ssub.s32 1, %s3
  %s6 = scalar_select 0, %s5, %s3
  %s7 = sshll.u32 %s0, 4
  %s8 = int_to_ptr.vmem [resolvable:$true] %s7
  %10 = dma.vmem_to_smem %s8, 16, [#allocation3], [#allocation2]
  %11 = dma.done [#allocation2], 16
  %12 = sfence
  // Predicated region
  $region2: #{embedding_lookup.1} parent=0 // pred_check
    _
  $region3: #{embedding_lookup.1} parent=0 // pred_check_branch
    %14 = sbr.rel (0) target = $region5
  $region4: #{embedding_lookup.1} parent=0 // pred_region
    _
  $region5: #{embedding_lookup.1} parent=0 // pred_fallthru
    _
  %s15 = smul.u32 0, 8
  %s16 = sld [smem:[#allocation3 + %s15]]
  %s17 = scalar_lea.vmem %s1, %s16
  %v18 = vld [vmem:[%s17] sm:$0x1]
  %vm19 = vcmask 253952
  %20 = vst.msk [vmem:[%s2] sm:$0x1] %vm19, %v18
  %s21 = sadd.s32 %s15, 1
  %s22 = sld [smem:[#allocation3 + %s21]]
  %s23 = scalar_lea.vmem %s1, %s22
  %v24 = vld [vmem:[%s23] sm:$0x1]
  %25 = vst.msk [vmem:[%s2 + $0x1] sm:$0x1] %vm19, %v24
  %s26 = sadd.s32 %s15, 2
  %s27 = sld [smem:[#allocation3 + %s26]]
  %s28 = scalar_lea.vmem %s1, %s27
  %v29 = vld [vmem:[%s28] sm:$0x1]
  %30 = vst.msk [vmem:[%s2 + $0x2] sm:$0x1] %vm19, %v29
  %s31 = sadd.s32 %s15, 3
  %s32 = sld [smem:[#allocation3 + %s31]]
  %s33 = scalar_lea.vmem %s1, %s32
  %v34 = vld [vmem:[%s33] sm:$0x1]
  %35 = vst.msk [vmem:[%s2 + $0x3] sm:$0x1] %vm19, %v34
  %s36 = sadd.s32 %s15, 4
  %s37 = sld [smem:[#allocation3 + %s36]]
  %s38 = scalar_lea.vmem %s1, %s37
  %v39 = vld [vmem:[%s38] sm:$0x1]
  %40 = vst.msk [vmem:[%s2 + $0x4] sm:$0x1] %vm19, %v39
  %s41 = sadd.s32 %s15, 5
  %s42 = sld [smem:[#allocation3 + %s41]]
  %s43 = scalar_lea.vmem %s1, %s42
  %v44 = vld [vmem:[%s43] sm:$0x1]
  %45 = vst.msk [vmem:[%s2 + $0x5] sm:$0x1] %vm19, %v44
  %s46 = sadd.s32 %s15, 6
  %s47 = sld [smem:[#allocation3 + %s46]]
  %s48 = scalar_lea.vmem %s1, %s47
  %v49 = vld [vmem:[%s48] sm:$0x1]
  %50 = vst.msk [vmem:[%s2 + $0x6] sm:$0x1] %vm19, %v49
  %s51 = sadd.s32 %s15, 7
  %s52 = sld [smem:[#allocation3 + %s51]]
  %s53 = scalar_lea.vmem %s1, %s52
  %v54 = vld [vmem:[%s53] sm:$0x1]
  %55 = vst.msk [vmem:[%s2 + $0x7] sm:$0x1] %vm19, %v54
  // Predicated region
  $region6: #{embedding_lookup.1} parent=0 // pred_check
    _
  $region7: #{embedding_lookup.1} parent=0 // pred_check_branch
    %57 = sbr.rel (0) target = $region9
  $region8: #{embedding_lookup.1} parent=0 // pred_region
    _
  $region9: #{embedding_lookup.1} parent=0 // pred_fallthru
    _
  // Predicated region
  $region10: #{embedding_lookup.1} parent=0 // pred_check
    _
  $region11: #{embedding_lookup.1} parent=0 // pred_check_branch
    %59 = sbr.rel (0) target = $region13
  $region12: #{embedding_lookup.1} parent=0 // pred_region
    _
  $region13: #{embedding_lookup.1} parent=0 // pred_fallthru
    _

</llo_original>
